<compile_context>
chip_gen: v5e
topology: v5e:2x2
jax: 0.10.0
libtpu: 0.0.40
codegen_flags: <defaults>
</compile_context>

<pallas_src>
import functools

import jax
import jax.numpy as jnp
import numpy as np
from jax.experimental import pallas as pl
from jax.experimental.pallas import tpu as pltpu


def momentum_kernel(first_ref, vec_ref, mom_ref, learn_ref, out_ref, new_mom_ref,
                    *, alphas, one_minus_alphas):
    """One (R, TILE_L) lane-tile of the momentum update + readout.

    first_ref : (1,) int32 in SMEM    -- 1 iff momentum matrix was all zeros
    vec_ref   : (1, T) f32 in VMEM    -- input vector tile
    mom_ref   : (R, T) f32 in VMEM    -- previous momentum matrix tile
    learn_ref : (R, T) f32 in VMEM    -- learnable matrix tile
    out_ref   : (1, T) f32            -- output vector tile
    new_mom_ref:(R, T) f32            -- new momentum matrix tile (aliases mom in HBM)
    """
    N = len(alphas)
    v = vec_ref[...]                                   # (1, T)

    # ---- first call: rows 0..N-1 := 0, rows N..2N := v -------------------
    @pl.when(first_ref[0] != 0)
    def _init():
        row = jax.lax.broadcasted_iota(jnp.int32, new_mom_ref.shape, 0)
        new_mom_ref[...] = jnp.where(
            row >= N,
            jnp.broadcast_to(v, new_mom_ref.shape),
            jnp.zeros(new_mom_ref.shape, jnp.float32))

    # ---- steady state: EMA rows + flipped residual rows + 0.5*v ----------
    @pl.when(first_ref[0] == 0)
    def _update():
        new_mom_ref[N:N + 1, :] = 0.5 * v
        # alphas are compile-time Python scalars; the "flip" is a static
        # re-indexing of rows (no MXU, no runtime permute).
        for i in range(N):
            a = alphas[i]
            om = one_minus_alphas[i]
            ema_i = a * mom_ref[N + 1 + i:N + 2 + i, :] + om * v   # (1, T)
            new_mom_ref[N + 1 + i:N + 2 + i, :] = ema_i
            new_mom_ref[N - 1 - i:N - i, :] = v - ema_i            # flipped row

    # ---- readout: out = 2 * sum(softmax(learn, axis=0) * new_mom, axis=0) --
    new_mom = new_mom_ref[...]                         # (R, T)
    learn = learn_ref[...]                             # (R, T)
    m = jnp.max(learn, axis=0, keepdims=True)
    e = jnp.exp(learn - m)
    inv_denom = pl.reciprocal(jnp.sum(e, axis=0, keepdims=True), approx=True)
    out_ref[...] = 2.0 * jnp.sum(e * new_mom, axis=0, keepdims=True) * inv_denom


def _round_up(x, m):
    return ((x + m - 1) // m) * m


def momentum_forward(vector, momentum_matrix, learnable_matrix, momentum_params,
                     max_tile_l=16 * 1024):
    """Functional equivalent of Momentum.forward.

    Returns (output_vector[(L,)], new_momentum_matrix[(R, L)]).
    Note: the (padded) momentum input buffer is donated to the aliased output.
    """
    R, L = momentum_matrix.shape
    N = len(momentum_params)
    assert R == 2 * N + 1

    vec = jnp.asarray(vector, jnp.float32).reshape(1, L)
    mom = jnp.asarray(momentum_matrix, jnp.float32)
    learn = jnp.asarray(learnable_matrix, jnp.float32)

    # "first call" flag, computed once globally (a per-tile check would be wrong
    # once the kernel is tiled over L).
    is_first = jnp.all(mom == 0).astype(jnp.int32).reshape(1)

    # Lane-dense padding: L -> multiple of 128, then multiple of the tile.
    lp = _round_up(L, 128)
    tile_l = min(max_tile_l, lp)
    lp = _round_up(lp, tile_l)
    pad = lp - L
    if pad:
        vec = jnp.pad(vec, ((0, 0), (0, pad)))
        mom = jnp.pad(mom, ((0, 0), (0, pad)))
        learn = jnp.pad(learn, ((0, 0), (0, pad)))

    # Host-side precompute of alpha / (1 - alpha) in f32.
    alphas = tuple(float(np.float32(a)) for a in momentum_params)
    one_minus_alphas = tuple(float(np.float32(1.0) - np.float32(a))
                             for a in momentum_params)

    kernel = functools.partial(momentum_kernel, alphas=alphas,
                               one_minus_alphas=one_minus_alphas)

    grid = (lp // tile_l,)
    out, new_mom = pl.pallas_call(
        kernel,
        out_shape=(jax.ShapeDtypeStruct((1, lp), jnp.float32),
                   jax.ShapeDtypeStruct((R, lp), jnp.float32)),
        grid=grid,
        in_specs=[
            pl.BlockSpec(memory_space=pltpu.MemorySpace.SMEM),   # is_first flag
            pl.BlockSpec((1, tile_l), lambda i: (0, i)),         # vector
            pl.BlockSpec((R, tile_l), lambda i: (0, i)),         # momentum matrix
            pl.BlockSpec((R, tile_l), lambda i: (0, i)),         # learnable matrix
        ],
        out_specs=(
            pl.BlockSpec((1, tile_l), lambda i: (0, i)),         # output vector
            pl.BlockSpec((R, tile_l), lambda i: (0, i)),         # new momentum
        ),
        # momentum input (arg index 2) writes back in place over its HBM buffer.
        input_output_aliases={2: 1},
        compiler_params=pltpu.CompilerParams(
            dimension_semantics=("parallel",)),
    )(is_first, vec, mom, learn)

    return out[0, :L], new_mom[:, :L]


def momentum_ref(vector, mom, learn, momentum_params):
    """Pure-JAX reference mirroring the PyTorch forward."""
    N = len(momentum_params)
    L = mom.shape[1]
    vector = vector.reshape(1, L).astype(jnp.float32)
    alpha = jnp.asarray(momentum_params, jnp.float32)[:, None]

    first = mom.at[N:].set(jnp.broadcast_to(vector, (N + 1, L)))
    ema = alpha * mom[N + 1:] + (1.0 - alpha) * vector
    new = jnp.zeros_like(mom)
    new = new.at[N].set(0.5 * vector[0])
    new = new.at[N + 1:].set(ema)
    new = new.at[:N].set(jnp.flip(vector - ema, axis=0))

    new_mom = jnp.where(jnp.all(mom == 0), first, new)
    sm = jax.nn.softmax(learn, axis=0)
    out = 2.0 * jnp.sum(sm * new_mom, axis=0)
    return out, new_mom


if __name__ == "__main__":
    # configs.momentum_params and vector_len (small synthetic setup)
    momentum_params = [0.9, 0.7, 0.5]
    N = len(momentum_params)
    R = 2 * N + 1
    vector_len = 32

    # deterministic parameter init, exactly as in Momentum.__init__
    learnable = np.zeros((R, vector_len), np.float32)
    for idx in range(R):
        learnable[idx, :] = -((N - idx) ** 2 / 4.0)
    learnable = jnp.asarray(learnable)

    momentum_matrix = jnp.zeros((R, vector_len), jnp.float32)

    key = jax.random.PRNGKey(0)
    k1, k2 = jax.random.split(key)
    v1 = jax.random.normal(k1, (1, vector_len), jnp.float32)
    v2 = jax.random.normal(k2, (1, vector_len), jnp.float32)

    # first call: exercises the "all zeros -> initialize" branch
    out1, mom1 = momentum_forward(v1, momentum_matrix, learnable, momentum_params)
    # second call: exercises the EMA-update + flip branch
    out2, mom2 = momentum_forward(v2, mom1, learnable, momentum_params)
    jax.block_until_ready((out1, mom1, out2, mom2))

    # check against pure-JAX reference
    r_out1, r_mom1 = momentum_ref(v1, momentum_matrix, learnable, momentum_params)
    r_out2, r_mom2 = momentum_ref(v2, r_mom1, learnable, momentum_params)
    np.testing.assert_allclose(np.asarray(mom1), np.asarray(r_mom1), rtol=1e-6, atol=1e-6)
    np.testing.assert_allclose(np.asarray(mom2), np.asarray(r_mom2), rtol=1e-6, atol=1e-6)
    # output uses the EUP approximate reciprocal for the softmax denominator
    np.testing.assert_allclose(np.asarray(out1), np.asarray(r_out1), rtol=2e-3, atol=2e-3)
    np.testing.assert_allclose(np.asarray(out2), np.asarray(r_out2), rtol=2e-3, atol=2e-3)

    print("KERNEL_OK")
</pallas_src>

<mosaic_0001>
module attributes {stable_mosaic.version = 11 : i64} {
  func.func @momentum_kernel(%arg0: i32, %arg1: memref<1xi32, #tpu.memory_space<smem>>, %arg2: memref<1x128xf32, #tpu.memory_space<vmem>>, %arg3: memref<7x128xf32, #tpu.memory_space<vmem>>, %arg4: memref<7x128xf32, #tpu.memory_space<vmem>>, %arg5: memref<1x128xf32, #tpu.memory_space<vmem>>, %arg6: memref<7x128xf32, #tpu.memory_space<vmem>>) attributes {dimension_semantics = [#tpu.dimension_semantics<parallel>], iteration_bounds = array<i64: 1>, scalar_prefetch = 0 : i64, scratch_operands = 0 : i64, tpu.core_type = #tpu.core_type<tc>, window_params = [{transform_indices = @transform_0, window_bounds = array<i64: 1>}, {transform_indices = @transform_1, window_bounds = array<i64: 1, 128>}, {transform_indices = @transform_2, window_bounds = array<i64: 7, 128>}, {transform_indices = @transform_3, window_bounds = array<i64: 7, 128>}, {transform_indices = @transform_4, window_bounds = array<i64: 1, 128>}, {transform_indices = @transform_5, window_bounds = array<i64: 7, 128>}]} {
    %c0 = arith.constant 0 : index
    %c0_0 = arith.constant 0 : index
    %0 = vector.load %arg2[%c0, %c0_0] : memref<1x128xf32, #tpu.memory_space<vmem>>, vector<1x128xf32>
    %c0_1 = arith.constant 0 : index
    %1 = memref.load %arg1[%c0_1] : memref<1xi32, #tpu.memory_space<smem>>
    %c0_i32 = arith.constant 0 : i32
    %2 = arith.cmpi ne, %1, %c0_i32 : i32
    %3 = arith.extui %2 : i1 to i32
    %c0_i32_2 = arith.constant 0 : i32
    %4 = arith.cmpi ne, %3, %c0_i32_2 : i32
    scf.if %4 {
      %26 = tpu.iota {dimensions = array<i32: 0>} : vector<7x128xi32>
      %c3_i32 = arith.constant 3 : i32
      %27 = vector.broadcast %c3_i32 : i32 to vector<7x128xi32>
      %28 = arith.cmpi sge, %26, %27 : vector<7x128xi32>
      %29 = vector.shape_cast %0 : vector<1x128xf32> to vector<1x128xf32>
      %30 = vector.broadcast %29 : vector<1x128xf32> to vector<7x128xf32>
      %cst_15 = arith.constant 0.000000e+00 : f32
      %31 = vector.broadcast %cst_15 : f32 to vector<7x128xf32>
      %32 = arith.select %28, %30, %31 : vector<7x128xi1>, vector<7x128xf32>
      %c0_16 = arith.constant 0 : index
      %c0_17 = arith.constant 0 : index
      %33 = vector.load %arg6[%c0_16, %c0_17] : memref<7x128xf32, #tpu.memory_space<vmem>>, vector<7x128xf32>
      tpu.vector_store %arg6[%c0_16, %c0_17], %32 {strides = array<i32>} : memref<7x128xf32, #tpu.memory_space<vmem>>, vector<7x128xf32>,
    } else {
    }
    %c0_3 = arith.constant 0 : index
    %5 = memref.load %arg1[%c0_3] : memref<1xi32, #tpu.memory_space<smem>>
    %c0_i32_4 = arith.constant 0 : i32
    %6 = arith.cmpi eq, %5, %c0_i32_4 : i32
    %7 = arith.extui %6 : i1 to i32
    %c0_i32_5 = arith.constant 0 : i32
    %8 = arith.cmpi ne, %7, %c0_i32_5 : i32
    scf.if %8 {
      %cst_15 = arith.constant 5.000000e-01 : f32
      %26 = vector.broadcast %cst_15 : f32 to vector<1x128xf32>
      %27 = arith.mulf %26, %0 : vector<1x128xf32>
      %c3 = arith.constant 3 : index
      %c0_16 = arith.constant 0 : index
      %28 = vector.load %arg6[%c3, %c0_16] : memref<7x128xf32, #tpu.memory_space<vmem>>, vector<1x128xf32>
      tpu.vector_store %arg6[%c3, %c0_16], %27 {strides = array<i32>} : memref<7x128xf32, #tpu.memory_space<vmem>>, vector<1x128xf32>,
      %c4 = arith.constant 4 : index
      %c0_17 = arith.constant 0 : index
      %29 = vector.load %arg3[%c4, %c0_17] : memref<7x128xf32, #tpu.memory_space<vmem>>, vector<1x128xf32>
      %cst_18 = arith.constant 0.899999976 : f32
      %30 = vector.broadcast %cst_18 : f32 to vector<1x128xf32>
      %31 = arith.mulf %30, %29 : vector<1x128xf32>
      %cst_19 = arith.constant 0.100000024 : f32
      %32 = vector.broadcast %cst_19 : f32 to vector<1x128xf32>
      %33 = arith.mulf %32, %0 : vector<1x128xf32>
      %34 = arith.addf %31, %33 : vector<1x128xf32>
      %c4_20 = arith.constant 4 : index
      %c0_21 = arith.constant 0 : index
      %35 = vector.load %arg6[%c4_20, %c0_21] : memref<7x128xf32, #tpu.memory_space<vmem>>, vector<1x128xf32>
      tpu.vector_store %arg6[%c4_20, %c0_21], %34 {strides = array<i32>} : memref<7x128xf32, #tpu.memory_space<vmem>>, vector<1x128xf32>,
      %36 = arith.subf %0, %34 : vector<1x128xf32>
      %c2 = arith.constant 2 : index
      %c0_22 = arith.constant 0 : index
      %37 = vector.load %arg6[%c2, %c0_22] : memref<7x128xf32, #tpu.memory_space<vmem>>, vector<1x128xf32>
      tpu.vector_store %arg6[%c2, %c0_22], %36 {strides = array<i32>} : memref<7x128xf32, #tpu.memory_space<vmem>>, vector<1x128xf32>,
      %c5 = arith.constant 5 : index
      %c0_23 = arith.constant 0 : index
      %38 = vector.load %arg3[%c5, %c0_23] : memref<7x128xf32, #tpu.memory_space<vmem>>, vector<1x128xf32>
      %cst_24 = arith.constant 0.699999988 : f32
      %39 = vector.broadcast %cst_24 : f32 to vector<1x128xf32>
      %40 = arith.mulf %39, %38 : vector<1x128xf32>
      %cst_25 = arith.constant 3.000000e-01 : f32
      %41 = vector.broadcast %cst_25 : f32 to vector<1x128xf32>
      %42 = arith.mulf %41, %0 : vector<1x128xf32>
      %43 = arith.addf %40, %42 : vector<1x128xf32>
      %c5_26 = arith.constant 5 : index
      %c0_27 = arith.constant 0 : index
      %44 = vector.load %arg6[%c5_26, %c0_27] : memref<7x128xf32, #tpu.memory_space<vmem>>, vector<1x128xf32>
      tpu.vector_store %arg6[%c5_26, %c0_27], %43 {strides = array<i32>} : memref<7x128xf32, #tpu.memory_space<vmem>>, vector<1x128xf32>,
      %45 = arith.subf %0, %43 : vector<1x128xf32>
      %c1 = arith.constant 1 : index
      %c0_28 = arith.constant 0 : index
      %46 = vector.load %arg6[%c1, %c0_28] : memref<7x128xf32, #tpu.memory_space<vmem>>, vector<1x128xf32>
      tpu.vector_store %arg6[%c1, %c0_28], %45 {strides = array<i32>} : memref<7x128xf32, #tpu.memory_space<vmem>>, vector<1x128xf32>,
      %c6 = arith.constant 6 : index
      %c0_29 = arith.constant 0 : index
      %47 = vector.load %arg3[%c6, %c0_29] : memref<7x128xf32, #tpu.memory_space<vmem>>, vector<1x128xf32>
      %cst_30 = arith.constant 5.000000e-01 : f32
      %48 = vector.broadcast %cst_30 : f32 to vector<1x128xf32>
      %49 = arith.mulf %48, %47 : vector<1x128xf32>
      %cst_31 = arith.constant 5.000000e-01 : f32
      %50 = vector.broadcast %cst_31 : f32 to vector<1x128xf32>
      %51 = arith.mulf %50, %0 : vector<1x128xf32>
      %52 = arith.addf %49, %51 : vector<1x128xf32>
      %c6_32 = arith.constant 6 : index
      %c0_33 = arith.constant 0 : index
      %53 = vector.load %arg6[%c6_32, %c0_33] : memref<7x128xf32, #tpu.memory_space<vmem>>, vector<1x128xf32>
      tpu.vector_store %arg6[%c6_32, %c0_33], %52 {strides = array<i32>} : memref<7x128xf32, #tpu.memory_space<vmem>>, vector<1x128xf32>,
      %54 = arith.subf %0, %52 : vector<1x128xf32>
      %c0_34 = arith.constant 0 : index
      %c0_35 = arith.constant 0 : index
      %55 = vector.load %arg6[%c0_34, %c0_35] : memref<7x128xf32, #tpu.memory_space<vmem>>, vector<1x128xf32>
      tpu.vector_store %arg6[%c0_34, %c0_35], %54 {strides = array<i32>} : memref<7x128xf32, #tpu.memory_space<vmem>>, vector<1x128xf32>,
    } else {
    }
    %c0_6 = arith.constant 0 : index
    %c0_7 = arith.constant 0 : index
    %9 = vector.load %arg6[%c0_6, %c0_7] : memref<7x128xf32, #tpu.memory_space<vmem>>, vector<7x128xf32>
    %c0_8 = arith.constant 0 : index
    %c0_9 = arith.constant 0 : index
    %10 = vector.load %arg4[%c0_8, %c0_9] : memref<7x128xf32, #tpu.memory_space<vmem>>, vector<7x128xf32>
    %cst = arith.constant dense<0xFF800000> : vector<128xf32>
    %11 = vector.multi_reduction <maximumf>, %10, %cst [0] : vector<7x128xf32> to vector<128xf32>
    %12 = vector.shape_cast %11 : vector<128xf32> to vector<1x128xf32>
    %13 = vector.broadcast %12 : vector<1x128xf32> to vector<7x128xf32>
    %14 = arith.subf %10, %13 : vector<7x128xf32>
    %15 = math.exp %14 : vector<7x128xf32>
    %cst_10 = arith.constant dense<0.000000e+00> : vector<128xf32>
    %16 = vector.multi_reduction <add>, %15, %cst_10 [0] : vector<7x128xf32> to vector<128xf32>
    %17 = vector.shape_cast %16 : vector<128xf32> to vector<1x128xf32>
    %18 = tpu.reciprocal %17 {approx = true} : vector<1x128xf32> -> vector<1x128xf32>
    %19 = arith.mulf %15, %9 : vector<7x128xf32>
    %cst_11 = arith.constant dense<0.000000e+00> : vector<128xf32>
    %20 = vector.multi_reduction <add>, %19, %cst_11 [0] : vector<7x128xf32> to vector<128xf32>
    %21 = vector.shape_cast %20 : vector<128xf32> to vector<1x128xf32>
    %cst_12 = arith.constant 2.000000e+00 : f32
    %22 = vector.broadcast %cst_12 : f32 to vector<1x128xf32>
    %23 = arith.mulf %22, %21 : vector<1x128xf32>
    %24 = arith.mulf %23, %18 : vector<1x128xf32>
    %c0_13 = arith.constant 0 : index
    %c0_14 = arith.constant 0 : index
    %25 = vector.load %arg5[%c0_13, %c0_14] : memref<1x128xf32, #tpu.memory_space<vmem>>, vector<1x128xf32>
    tpu.vector_store %arg5[%c0_13, %c0_14], %24 {strides = array<i32>} : memref<1x128xf32, #tpu.memory_space<vmem>>, vector<1x128xf32>,
    return
  }
  func.func @transform_0(%arg0: i32) -> i32 {
    %c0_i32 = arith.constant 0 : i32
    %c0_i32_0 = arith.constant 0 : i32
    return %c0_i32 : i32
  }
  func.func @transform_1(%arg0: i32) -> (i32, i32) {
    %c0_i32 = arith.constant 0 : i32
    %c0_i32_0 = arith.constant 0 : i32
    return %c0_i32, %arg0 : i32, i32
  }
  func.func @transform_2(%arg0: i32) -> (i32, i32) {
    %c0_i32 = arith.constant 0 : i32
    %c0_i32_0 = arith.constant 0 : i32
    return %c0_i32, %arg0 : i32, i32
  }
  func.func @transform_3(%arg0: i32) -> (i32, i32) {
    %c0_i32 = arith.constant 0 : i32
    %c0_i32_0 = arith.constant 0 : i32
    return %c0_i32, %arg0 : i32, i32
  }
  func.func @transform_4(%arg0: i32) -> (i32, i32) {
    %c0_i32 = arith.constant 0 : i32
    %c0_i32_0 = arith.constant 0 : i32
    return %c0_i32, %arg0 : i32, i32
  }
  func.func @transform_5(%arg0: i32) -> (i32, i32) {
    %c0_i32 = arith.constant 0 : i32
    %c0_i32_0 = arith.constant 0 : i32
    return %c0_i32, %arg0 : i32, i32
  }
}

</mosaic_0001>

<llo_original>
// kernel: tpu_custom_call.1
$region0: #{tpu_custom_call.1}
  #allocation0 [shape = 'u32[]', space=smem, size = 0x4, offset = 0x4, fixed_abs, tag = 'smem constant byte address 0x4 - core index']
  #allocation1 [shape = 'u32[72,128]{1,0:T(1,128)}', space=vmem, size = 0x9000, scoped, tag = 'internal scratch']
  #allocation2 [shape = 's32[1]{0:T(128)S(6)}', space=smem, size = 0x200, scoped, tag = 'scoped memory for tpu_custom_call.1']
  %s0 = inlined_call_operand.<no memory space> [shape: s32[1], index: 0, kind: input, shape index: {}]
  %s1 = inlined_call_operand.vmem [shape: f32[1,128], index: 1, kind: input, shape index: {}]
  %s2 = inlined_call_operand.hbm [shape: f32[7,128], index: 2, kind: input, shape index: {}, may-alias: {2,5}]
  %s3 = inlined_call_operand.vmem [shape: f32[7,128], index: 3, kind: input, shape index: {}]
  %s4 = inlined_call_operand.hbm [shape: f32[1,128], index: 4, kind: output, shape index: {0}]
  %s5 = inlined_call_operand.hbm [shape: f32[7,128], index: 5, kind: output, shape index: {1}, may-alias: {2,5}]
  %6 = xla_tuple %s4, %s5
  %s7 = sld [smem:[#allocation0]]
  $region46: #{tpu_custom_call.1} parent=0
    _
  %s9 = ssub.s32 1, %s7
  %s10 = scalar_select 0, %s9, %s7
  %11 = sst [smem:[#allocation2]] %s0
  $region1: #{tpu_custom_call.1} parent=0
    #allocation3 [shape = 'u8[4096]{0}', space=vmem, size = 0x1000, scoped, tag = 'input window, operand 2, single buffered']
    #allocation4 [shape = 's32[1]{0}', space=sflag, size = 0x4, scoped, tag = 'scoped memory for tpu_custom_call.1']
    #allocation5 [shape = 's32[1]{0}', space=sflag, size = 0x4, scoped, tag = 'scoped memory for tpu_custom_call.1']
    #allocation6 [shape = 'u8[512]{0}', space=vmem, size = 0x400, scoped, tag = 'output window, operand 0, single buffered']
    #allocation7 [shape = 'u8[4096]{0}', space=vmem, size = 0x1000, scoped, tag = 'output window, operand 1, single buffered']
    #allocation8 [shape = 's32[1]{0}', space=sflag, size = 0x4, scoped, tag = 'scoped memory for tpu_custom_call.1']
    %12 = vsyncpa [#allocation4], 0
    %13 = vsyncpa [#allocation5], 0
    %14 = vsyncpa [#allocation8], 0
    // Predicated region
    $region2: #{tpu_custom_call.1} parent=1 // pred_check
      _
    $region3: #{tpu_custom_call.1} parent=1 // pred_check_branch
      %16 = sbr.rel (0) target = $region5
    $region4: #{tpu_custom_call.1} parent=1 // pred_region
      _
    $region5: #{tpu_custom_call.1} parent=1 // pred_fallthru
      _
    // Predicated region
    $region6: #{tpu_custom_call.1} parent=1 // pred_check
      _
    $region7: #{tpu_custom_call.1} parent=1 // pred_check_branch
      %18 = sbr.rel (0) target = $region9
    $region8: #{tpu_custom_call.1} parent=1 // pred_region
      _
    $region9: #{tpu_custom_call.1} parent=1 // pred_fallthru
      _
    // Predicated region
    $region10: #{tpu_custom_call.1} parent=1 // pred_check
      _
    $region11: #{tpu_custom_call.1} parent=1 // pred_check_branch
      %20 = sbr.rel (0) target = $region13
    $region12: #{tpu_custom_call.1} parent=1 // pred_region
      %22 = vsyncadd [#allocation4], 0
      %s24 = sshll.u32 %s2, 4
      %s25 = int_to_ptr.hbm [resolvable:$true] %s24
      %s26 = sshll.u32 [#allocation3], 4
      %s27 = int_to_ptr.vmem [resolvable:$true] %s26
      %29 = dma.hbm_to_vmem [thread:$0]  %s25, 128, %s27, [#allocation4]
    $region13: #{tpu_custom_call.1} parent=1 // pred_fallthru
      _
    // Predicated region
    $region14: #{tpu_custom_call.1} parent=1 // pred_check
      _
    $region15: #{tpu_custom_call.1} parent=1 // pred_check_branch
      %31 = sbr.rel (0) target = $region17
    $region16: #{tpu_custom_call.1} parent=1 // pred_region
      _
    $region17: #{tpu_custom_call.1} parent=1 // pred_fallthru
      _
    // Predicated region
    $region18: #{tpu_custom_call.1} parent=1 // pred_check
      _
    $region19: #{tpu_custom_call.1} parent=1 // pred_check_branch
      %33 = sbr.rel (0) target = $region21
    $region20: #{tpu_custom_call.1} parent=1 // pred_region
      %35 = dma.done [#allocation4], 128
    $region21: #{tpu_custom_call.1} parent=1 // pred_fallthru
      _
    %v36 = vld [vmem:[%s1] sm:$0x1]
    %s37 = sld [smem:[#allocation2]]
    %p38 = scmp.ne.s32.totalorder %s37, 0
    // Predicated region
    $region22: #{tpu_custom_call.1} parent=1 // pred_check
      %p39 = pneg %p38
    $region23: #{tpu_custom_call.1} parent=1 // pred_check_branch
      %41 = sbr.rel (%p39) target = $region25
    $region24: #{tpu_custom_call.1} parent=1 // pred_region
      %v42 = vlaneseq
      %v43 = vshrl.u32 %v42, 7
      %vm44 = vcmp.ge.s32.totalorder %v43, 3
      %v46 = vperm.slane %v36, 0
      %v48 = vsel %vm44, %v46, 0.0
      %49 = vst [vmem:[#allocation7] sm:$0x7f] %v48
    $region25: #{tpu_custom_call.1} parent=1 // pred_fallthru
      _
    %s50 = sld [smem:[#allocation2]]
    %p51 = scmp.eq.s32.totalorder %s50, 0
    // Predicated region
    $region26: #{tpu_custom_call.1} parent=1 // pred_check
      %p52 = pneg %p51
    $region27: #{tpu_custom_call.1} parent=1 // pred_check_branch
      %54 = sbr.rel (%p52) target = $region29
    $region28: #{tpu_custom_call.1} parent=1 // pred_region
      %v55 = vmul.f32 %v36, 0.5
      %56 = vst [vmem:[#allocation7 + $0x3] sm:$0x1] %v55
      %v57 = vld [vmem:[#allocation3 + $0x4] sm:$0x1]
      %v58 = vmul.f32 %v57, 0.9
      %v59 = vmul.f32 %v36, 0.100000024
      %v60 = vadd.f32 %v58, %v59
      %61 = vst [vmem:[#allocation7 + $0x4] sm:$0x1] %v60
      %v62 = vsub.f32 %v36, %v60
      %63 = vst [vmem:[#allocation7 + $0x2] sm:$0x1] %v62
      %v64 = vld [vmem:[#allocation3 + $0x5] sm:$0x1]
      %v65 = vmul.f32 %v64, 0.7
      %v66 = vmul.f32 %v36, 0.3
      %v67 = vadd.f32 %v65, %v66
      %68 = vst [vmem:[#allocation7 + $0x5] sm:$0x1] %v67
      %v69 = vsub.f32 %v36, %v67
      %70 = vst [vmem:[#allocation7 + $0x1] sm:$0x1] %v69
      %v71 = vld [vmem:[#allocation3 + $0x6] sm:$0x1]
      %v72 = vmul.f32 %v71, 0.5
      %v73 = vadd.f32 %v72, %v55
      %74 = vst [vmem:[#allocation7 + $0x6] sm:$0x1] %v73
      %v75 = vsub.f32 %v36, %v73
      %76 = vst [vmem:[#allocation7] sm:$0x1] %v75
    $region29: #{tpu_custom_call.1} parent=1 // pred_fallthru
      _
    %v77 = vld [vmem:[#allocation7] sm:$0x7f]
    %v78 = vld [vmem:[%s3] sm:$0x7f]
    %vm79 = vcmask 1046528
    %v80 = vsel %vm79, %v78, -inf
    %v81 = vrot.slane %v80, 4
    %v82 = vmax.f32 %v80, %v81
    %v83 = vrot.slane %v82, 2
    %v84 = vmax.f32 %v82, %v83
    %v85 = vrot.slane %v84, 1
    %v86 = vmax.f32 %v84, %v85
    %v87 = vsub.f32 %v78, %v86
    %v88 = vmul.f32 %v87, 1.442695
    %v89 = vpow.pop %v88
    %v90 = vsel %vm79, %v89, 0.0
    %v91 = vrot.slane %v90, 4
    %v92 = vadd.f32 %v90, %v91
    %v93 = vrot.slane %v92, 2
    %v94 = vadd.f32 %v92, %v93
    %v95 = vrot.slane %v94, 1
    %v96 = vadd.f32 %v94, %v95
    %v97 = vrcp.pop %v96
    %v98 = vmul.f32 %v89, %v77
    %v99 = vsel %vm79, %v98, 0.0
    %v100 = vrot.slane %v99, 4
    %v101 = vadd.f32 %v99, %v100
    %v102 = vrot.slane %v101, 2
    %v103 = vadd.f32 %v101, %v102
    %v104 = vrot.slane %v103, 1
    %v105 = vadd.f32 %v103, %v104
    %v106 = vmul.f32 %v105, 2.0
    %v107 = vmul.f32 %v106, %v97
    %108 = vst [vmem:[#allocation6] sm:$0x1] %v107
    // Predicated region
    $region30: #{tpu_custom_call.1} parent=1 // pred_check
      _
    $region31: #{tpu_custom_call.1} parent=1 // pred_check_branch
      %110 = sbr.rel (0) target = $region33
    $region32: #{tpu_custom_call.1} parent=1 // pred_region
      %112 = vsyncadd [#allocation5], 0
      %s114 = sshll.u32 [#allocation6], 4
      %s115 = int_to_ptr.vmem [resolvable:$true] %s114
      %s116 = sshll.u32 %s4, 4
      %s117 = int_to_ptr.hbm [resolvable:$true] %s116
      %119 = dma.vmem_to_hbm [thread:$0]  %s115, 16, %s117, [#allocation5]
    $region33: #{tpu_custom_call.1} parent=1 // pred_fallthru
      _
    // Predicated region
    $region34: #{tpu_custom_call.1} parent=1 // pred_check
      _
    $region35: #{tpu_custom_call.1} parent=1 // pred_check_branch
      %121 = sbr.rel (0) target = $region37
    $region36: #{tpu_custom_call.1} parent=1 // pred_region
      %123 = vsyncadd [#allocation8], 0
      %s125 = sshll.u32 [#allocation7], 4
      %s126 = int_to_ptr.vmem [resolvable:$true] %s125
      %s127 = sshll.u32 %s5, 4
      %s128 = int_to_ptr.hbm [resolvable:$true] %s127
      %130 = dma.vmem_to_hbm [thread:$0]  %s126, 128, %s128, [#allocation8]
    $region37: #{tpu_custom_call.1} parent=1 // pred_fallthru
      _
    // Predicated region
    $region38: #{tpu_custom_call.1} parent=1 // pred_check
      _
    $region39: #{tpu_custom_call.1} parent=1 // pred_check_branch
      %132 = sbr.rel (0) target = $region41
    $region40: #{tpu_custom_call.1} parent=1 // pred_region
      %134 = dma.done [#allocation5], 16
    $region41: #{tpu_custom_call.1} parent=1 // pred_fallthru
      _
    // Predicated region
    $region42: #{tpu_custom_call.1} parent=1 // pred_check
      _
    $region43: #{tpu_custom_call.1} parent=1 // pred_check_branch
      %136 = sbr.rel (0) target = $region45
    $region44: #{tpu_custom_call.1} parent=1 // pred_region
      %138 = dma.done [#allocation8], 128
    $region45: #{tpu_custom_call.1} parent=1 // pred_fallthru
      _
    %139 = vsyncpa [#allocation4], 1
    %140 = vsyncpa [#allocation5], 1
    %141 = vsyncpa [#allocation8], 1

</llo_original>
